<compile_context>
chip_gen: v5e
topology: v5e:2x2
jax: 0.10.0
libtpu: 0.0.40
codegen_flags: <defaults>
</compile_context>

<pallas_src>
import functools
import math

import jax
import jax.numpy as jnp
from jax import lax
from jax.experimental import pallas as pl
from jax.experimental.pallas import tpu as pltpu


# ----------------------------------------------------------------------------
# Fused kernel (single grid step): in_proj -> batched multi-head SDPA -> out_proj
#   x_ref     : (N*L, E) f32, rows are batch-major (row = n*L + l)
#   w_in_ref  : (E, 3E) bf16   (pre-transposed, q-scale folded)
#   b_in_ref  : (1, 3E) f32    (q-scale folded)
#   w_out_ref : (E, E)  bf16   (pre-transposed)
#   b_out_ref : (1, E)  f32
#   o_ref     : (N*L, E) f32
#   o_cat_ref : (N*L, E) f32 VMEM scratch (head reassembly before out_proj)
# ----------------------------------------------------------------------------
def _fused_mha_kernel(x_ref, w_in_ref, b_in_ref, w_out_ref, b_out_ref,
                      o_ref, o_cat_ref, *, num_heads, batch):
    R, E = x_ref.shape                       # R = N*L
    H = num_heads
    Dh = E // H
    N = batch
    L = R // N

    # --- in-projection over ALL batch*seq rows at once (bf16 MXU, f32 acc) ---
    x = x_ref[...].astype(jnp.bfloat16)
    qkv = jnp.dot(x, w_in_ref[...],
                  preferred_element_type=jnp.float32) + b_in_ref[...]   # (R, 3E) f32

    # --- fold heads into a leading batch dim: (H*N, L, Dh) -----------------
    # TODO(synk): at Dh=4 these per-head column slices are sub-vreg lane
    # extracts; with head_dim >= 128 they become free lane-block slices.  A
    # head-batched in-VMEM relayout is not worth it at this head size.
    def head_blk(col0):
        # (R, Dh) slice -> (N, L, Dh); rows are already batch-major, so this is
        # a leading-dims-only reshape (no data movement across lanes).
        return qkv[:, col0:col0 + Dh].reshape(N, L, Dh)

    qh = jnp.concatenate([head_blk(h * Dh) for h in range(H)], axis=0)           # (H*N, L, Dh)
    kh = jnp.concatenate([head_blk(E + h * Dh) for h in range(H)], axis=0)
    vh = jnp.concatenate([head_blk(2 * E + h * Dh) for h in range(H)], axis=0)
    qh = qh.astype(jnp.bfloat16)
    kh = kh.astype(jnp.bfloat16)
    vh = vh.astype(jnp.bfloat16)

    # --- one batched QK^T / softmax / PV over all (head, batch) pairs -------
    s = jnp.einsum('bld,bmd->blm', qh, kh,
                   preferred_element_type=jnp.float32)                           # (H*N, L, L)
    s = s - jnp.max(s, axis=-1, keepdims=True)
    p = jnp.exp(s)
    # approx reciprocal -> EUP slot; deliberate (tiny) precision trade.
    p = p * pl.reciprocal(jnp.sum(p, axis=-1, keepdims=True), approx=True)
    o = jnp.einsum('blm,bmd->bld', p.astype(jnp.bfloat16), vh,
                   preferred_element_type=jnp.float32)                           # (H*N, L, Dh)

    # --- reassemble heads along lanes via VMEM scratch, then ONE fat out-proj
    o = o.reshape(H, N * L, Dh)              # leading-dims regroup only
    for h in range(H):
        o_cat_ref[:, h * Dh:(h + 1) * Dh] = o[h]
    out = jnp.dot(o_cat_ref[...].astype(jnp.bfloat16), w_out_ref[...],
                  preferred_element_type=jnp.float32) + b_out_ref[...]           # (R, E)
    # TODO(synk): out block last dim is E=32 (<128 lanes) -> masked stores;
    # lane-dense repack would need a minor-dim relayout, not worth it here.
    o_ref[...] = out.astype(o_ref.dtype)


# ----------------------------------------------------------------------------
# Parameters (PyTorch nn.MultiheadAttention layout) + one-time prep
# ----------------------------------------------------------------------------
class AttentionParams:
    """Matches torch.nn.MultiheadAttention(embed_dim=dim, num_heads=8) layout."""

    def __init__(self, key, dim):
        k1, k2, k3, k4 = jax.random.split(key, 4)
        bound = 1.0 / math.sqrt(dim)
        self.in_proj_weight = jax.random.uniform(
            k1, (3 * dim, dim), jnp.float32, -bound, bound)
        self.in_proj_bias = jax.random.uniform(
            k2, (3 * dim,), jnp.float32, -bound, bound)
        self.out_proj_weight = jax.random.uniform(
            k3, (dim, dim), jnp.float32, -bound, bound)
        self.out_proj_bias = jax.random.uniform(
            k4, (dim,), jnp.float32, -bound, bound)


def prepare_params(params, num_heads):
    """One-time prep: pre-transpose weights, fold 1/sqrt(Dh) into the q slice,
    cast weight matrices to bf16 (MXU-native); biases stay f32 (VPU add)."""
    E = params.out_proj_weight.shape[0]
    Dh = E // num_heads
    scale = 1.0 / math.sqrt(Dh)                          # 0.5 here -> exact in bf16
    w_in = params.in_proj_weight.T                       # (E, 3E)
    w_in = w_in.at[:, :E].multiply(scale)                # fold q scale into W
    b_in = params.in_proj_bias.at[:E].multiply(scale).reshape(1, 3 * E)
    w_out = params.out_proj_weight.T                     # (E, E)
    b_out = params.out_proj_bias.reshape(1, E)
    return (w_in.astype(jnp.bfloat16), b_in.astype(jnp.float32),
            w_out.astype(jnp.bfloat16), b_out.astype(jnp.float32))


# ----------------------------------------------------------------------------
# Forward: x (L, N, E) -> (L, N, E), mirroring nn.MultiheadAttention(x, x, x)[0]
# ----------------------------------------------------------------------------
def attention_module_forward(prepared, x, num_heads=8):
    w_in, b_in, w_out, b_out = prepared
    L, N, E = x.shape
    assert E % num_heads == 0
    R = N * L

    # Wrapper-side layout plumbing (tiny XLA ops at this size): batch-major
    # rows so the kernel sees one clean 2-D (N*L, E) tile.
    x2d = jnp.transpose(x, (1, 0, 2)).reshape(R, E)

    # TODO(synk): on v7x (2 TensorCores) a size-2 "parallel" batch-split grid
    # axis would engage both cores once compute-bound; at these shapes a single
    # grid step minimizes per-step pipeline overhead.
    out2d = pl.pallas_call(
        functools.partial(_fused_mha_kernel, num_heads=num_heads, batch=N),
        out_shape=jax.ShapeDtypeStruct((R, E), jnp.float32),
        grid=(1,),
        in_specs=[
            pl.BlockSpec((R, E), lambda i: (0, 0)),          # x (all tokens)
            pl.BlockSpec((E, 3 * E), lambda i: (0, 0)),      # w_in (resident)
            pl.BlockSpec((1, 3 * E), lambda i: (0, 0)),      # b_in
            pl.BlockSpec((E, E), lambda i: (0, 0)),          # w_out
            pl.BlockSpec((1, E), lambda i: (0, 0)),          # b_out
        ],
        out_specs=pl.BlockSpec((R, E), lambda i: (0, 0)),
        scratch_shapes=[pltpu.VMEM((R, E), jnp.float32)],    # head reassembly
        compiler_params=pltpu.CompilerParams(
            dimension_semantics=("arbitrary",),
            vmem_limit_bytes=32 * 1024 * 1024),
    )(x2d, w_in, b_in, w_out, b_out)

    return out2d.reshape(N, L, E).transpose(1, 0, 2)         # back to (L, N, E)


# ----------------------------------------------------------------------------
# Pure-JAX f32 reference (PyTorch weight layout / math) for a sanity check
# ----------------------------------------------------------------------------
def reference_forward(params, x, num_heads=8):
    L, N, E = x.shape
    Dh = E // num_heads
    scale = 1.0 / math.sqrt(Dh)
    qkv = x.reshape(L * N, E) @ params.in_proj_weight.T + params.in_proj_bias
    q, k, v = jnp.split(qkv, 3, axis=-1)

    def to_heads(t):
        return (t.reshape(L, N, num_heads, Dh)
                 .transpose(1, 2, 0, 3)
                 .reshape(N * num_heads, L, Dh))

    qh, kh, vh = to_heads(q) * scale, to_heads(k), to_heads(v)
    s = jnp.einsum('bld,bmd->blm', qh, kh)
    p = jax.nn.softmax(s, axis=-1)
    oh = jnp.einsum('blm,bmd->bld', p, vh)
    o = (oh.reshape(N, num_heads, L, Dh)
           .transpose(2, 0, 1, 3)
           .reshape(L * N, E))
    out = o @ params.out_proj_weight.T + params.out_proj_bias
    return out.reshape(L, N, E)


if __name__ == "__main__":
    dim = 32          # embed_dim, divisible by num_heads=8 -> head_dim=4
    num_heads = 8
    L, N = 8, 2       # seq length, batch

    key = jax.random.PRNGKey(0)
    kp, kx = jax.random.split(key)
    params = AttentionParams(kp, dim)
    x = jax.random.normal(kx, (L, N, dim), jnp.float32)

    prepared = prepare_params(params, num_heads)

    out = attention_module_forward(prepared, x, num_heads=num_heads)
    out = jax.block_until_ready(out)

    ref = reference_forward(params, x, num_heads=num_heads)
    assert out.shape == (L, N, dim)
    # bf16 MXU inputs + approx reciprocal -> loosened tolerance vs f32 reference
    assert jnp.allclose(out, ref, atol=5e-2, rtol=5e-2), (
        "mismatch vs reference; max abs diff = %e"
        % float(jnp.max(jnp.abs(out - ref))))

    print("KERNEL_OK")
</pallas_src>

<mosaic_0001>
module attributes {stable_mosaic.version = 11 : i64} {
  func.func @_fused_mha_kernel(%arg0: i32, %arg1: memref<16x32xf32, #tpu.memory_space<vmem>>, %arg2: memref<32x96xbf16, #tpu.memory_space<vmem>>, %arg3: memref<1x96xf32, #tpu.memory_space<vmem>>, %arg4: memref<32x32xbf16, #tpu.memory_space<vmem>>, %arg5: memref<1x32xf32, #tpu.memory_space<vmem>>, %arg6: memref<16x32xf32, #tpu.memory_space<vmem>>, %arg7: memref<16x32xf32, #tpu.memory_space<vmem>>) attributes {dimension_semantics = [#tpu.dimension_semantics<arbitrary>], iteration_bounds = array<i64: 1>, scalar_prefetch = 0 : i64, scratch_operands = 1 : i64, tpu.core_type = #tpu.core_type<tc>, window_params = [{pipeline_mode = #tpu.pipeline_mode<synchronous>, transform_indices = @transform_0, window_bounds = array<i64: 16, 32>}, {pipeline_mode = #tpu.pipeline_mode<synchronous>, transform_indices = @transform_1, window_bounds = array<i64: 32, 96>}, {pipeline_mode = #tpu.pipeline_mode<synchronous>, transform_indices = @transform_2, window_bounds = array<i64: 1, 96>}, {pipeline_mode = #tpu.pipeline_mode<synchronous>, transform_indices = @transform_3, window_bounds = array<i64: 32, 32>}, {pipeline_mode = #tpu.pipeline_mode<synchronous>, transform_indices = @transform_4, window_bounds = array<i64: 1, 32>}, {pipeline_mode = #tpu.pipeline_mode<synchronous>, transform_indices = @transform_5, window_bounds = array<i64: 16, 32>}]} {
    %c0 = arith.constant 0 : index
    %c0_0 = arith.constant 0 : index
    %0 = vector.load %arg1[%c0, %c0_0] : memref<16x32xf32, #tpu.memory_space<vmem>>, vector<16x32xf32>
    %1 = arith.truncf %0 : vector<16x32xf32> to vector<16x32xbf16>
    %c0_1 = arith.constant 0 : index
    %c0_2 = arith.constant 0 : index
    %2 = vector.load %arg2[%c0_1, %c0_2] : memref<32x96xbf16, #tpu.memory_space<vmem>>, vector<32x96xbf16>
    %cst = arith.constant dense<0.000000e+00> : vector<16x96xf32>
    %3 = tpu.matmul %1, %2, %cst {dimension_numbers = #tpu.dot_dimension_numbers<[1], [0], [0], [1], [0, 0, 1, 1], [], []>} : vector<16x32xbf16>, vector<32x96xbf16>, vector<16x96xf32> -> vector<16x96xf32>
    %c0_3 = arith.constant 0 : index
    %c0_4 = arith.constant 0 : index
    %4 = vector.load %arg3[%c0_3, %c0_4] : memref<1x96xf32, #tpu.memory_space<vmem>>, vector<1x96xf32>
    %5 = vector.broadcast %4 : vector<1x96xf32> to vector<16x96xf32>
    %6 = arith.addf %3, %5 : vector<16x96xf32>
    %7 = vector.extract_strided_slice %6 {offsets = [0, 0], sizes = [16, 4], strides = [1, 1]} : vector<16x96xf32> to vector<16x4xf32>
    %8 = vector.shape_cast %7 : vector<16x4xf32> to vector<2x8x4xf32>
    %9 = vector.extract_strided_slice %6 {offsets = [0, 4], sizes = [16, 4], strides = [1, 1]} : vector<16x96xf32> to vector<16x4xf32>
    %10 = vector.shape_cast %9 : vector<16x4xf32> to vector<2x8x4xf32>
    %11 = vector.extract_strided_slice %6 {offsets = [0, 8], sizes = [16, 4], strides = [1, 1]} : vector<16x96xf32> to vector<16x4xf32>
    %12 = vector.shape_cast %11 : vector<16x4xf32> to vector<2x8x4xf32>
    %13 = vector.extract_strided_slice %6 {offsets = [0, 12], sizes = [16, 4], strides = [1, 1]} : vector<16x96xf32> to vector<16x4xf32>
    %14 = vector.shape_cast %13 : vector<16x4xf32> to vector<2x8x4xf32>
    %15 = vector.extract_strided_slice %6 {offsets = [0, 16], sizes = [16, 4], strides = [1, 1]} : vector<16x96xf32> to vector<16x4xf32>
    %16 = vector.shape_cast %15 : vector<16x4xf32> to vector<2x8x4xf32>
    %17 = vector.extract_strided_slice %6 {offsets = [0, 20], sizes = [16, 4], strides = [1, 1]} : vector<16x96xf32> to vector<16x4xf32>
    %18 = vector.shape_cast %17 : vector<16x4xf32> to vector<2x8x4xf32>
    %19 = vector.extract_strided_slice %6 {offsets = [0, 24], sizes = [16, 4], strides = [1, 1]} : vector<16x96xf32> to vector<16x4xf32>
    %20 = vector.shape_cast %19 : vector<16x4xf32> to vector<2x8x4xf32>
    %21 = vector.extract_strided_slice %6 {offsets = [0, 28], sizes = [16, 4], strides = [1, 1]} : vector<16x96xf32> to vector<16x4xf32>
    %22 = vector.shape_cast %21 : vector<16x4xf32> to vector<2x8x4xf32>
    %23 = tpu.concatenate %8, %10, %12, %14, %16, %18, %20, %22 in 0 : vector<2x8x4xf32>, vector<2x8x4xf32>, vector<2x8x4xf32>, vector<2x8x4xf32>, vector<2x8x4xf32>, vector<2x8x4xf32>, vector<2x8x4xf32>, vector<2x8x4xf32> -> vector<16x8x4xf32>
    %24 = vector.extract_strided_slice %6 {offsets = [0, 32], sizes = [16, 4], strides = [1, 1]} : vector<16x96xf32> to vector<16x4xf32>
    %25 = vector.shape_cast %24 : vector<16x4xf32> to vector<2x8x4xf32>
    %26 = vector.extract_strided_slice %6 {offsets = [0, 36], sizes = [16, 4], strides = [1, 1]} : vector<16x96xf32> to vector<16x4xf32>
    %27 = vector.shape_cast %26 : vector<16x4xf32> to vector<2x8x4xf32>
    %28 = vector.extract_strided_slice %6 {offsets = [0, 40], sizes = [16, 4], strides = [1, 1]} : vector<16x96xf32> to vector<16x4xf32>
    %29 = vector.shape_cast %28 : vector<16x4xf32> to vector<2x8x4xf32>
    %30 = vector.extract_strided_slice %6 {offsets = [0, 44], sizes = [16, 4], strides = [1, 1]} : vector<16x96xf32> to vector<16x4xf32>
    %31 = vector.shape_cast %30 : vector<16x4xf32> to vector<2x8x4xf32>
    %32 = vector.extract_strided_slice %6 {offsets = [0, 48], sizes = [16, 4], strides = [1, 1]} : vector<16x96xf32> to vector<16x4xf32>
    %33 = vector.shape_cast %32 : vector<16x4xf32> to vector<2x8x4xf32>
    %34 = vector.extract_strided_slice %6 {offsets = [0, 52], sizes = [16, 4], strides = [1, 1]} : vector<16x96xf32> to vector<16x4xf32>
    %35 = vector.shape_cast %34 : vector<16x4xf32> to vector<2x8x4xf32>
    %36 = vector.extract_strided_slice %6 {offsets = [0, 56], sizes = [16, 4], strides = [1, 1]} : vector<16x96xf32> to vector<16x4xf32>
    %37 = vector.shape_cast %36 : vector<16x4xf32> to vector<2x8x4xf32>
    %38 = vector.extract_strided_slice %6 {offsets = [0, 60], sizes = [16, 4], strides = [1, 1]} : vector<16x96xf32> to vector<16x4xf32>
    %39 = vector.shape_cast %38 : vector<16x4xf32> to vector<2x8x4xf32>
    %40 = tpu.concatenate %25, %27, %29, %31, %33, %35, %37, %39 in 0 : vector<2x8x4xf32>, vector<2x8x4xf32>, vector<2x8x4xf32>, vector<2x8x4xf32>, vector<2x8x4xf32>, vector<2x8x4xf32>, vector<2x8x4xf32>, vector<2x8x4xf32> -> vector<16x8x4xf32>
    %41 = vector.extract_strided_slice %6 {offsets = [0, 64], sizes = [16, 4], strides = [1, 1]} : vector<16x96xf32> to vector<16x4xf32>
    %42 = vector.shape_cast %41 : vector<16x4xf32> to vector<2x8x4xf32>
    %43 = vector.extract_strided_slice %6 {offsets = [0, 68], sizes = [16, 4], strides = [1, 1]} : vector<16x96xf32> to vector<16x4xf32>
    %44 = vector.shape_cast %43 : vector<16x4xf32> to vector<2x8x4xf32>
    %45 = vector.extract_strided_slice %6 {offsets = [0, 72], sizes = [16, 4], strides = [1, 1]} : vector<16x96xf32> to vector<16x4xf32>
    %46 = vector.shape_cast %45 : vector<16x4xf32> to vector<2x8x4xf32>
    %47 = vector.extract_strided_slice %6 {offsets = [0, 76], sizes = [16, 4], strides = [1, 1]} : vector<16x96xf32> to vector<16x4xf32>
    %48 = vector.shape_cast %47 : vector<16x4xf32> to vector<2x8x4xf32>
    %49 = vector.extract_strided_slice %6 {offsets = [0, 80], sizes = [16, 4], strides = [1, 1]} : vector<16x96xf32> to vector<16x4xf32>
    %50 = vector.shape_cast %49 : vector<16x4xf32> to vector<2x8x4xf32>
    %51 = vector.extract_strided_slice %6 {offsets = [0, 84], sizes = [16, 4], strides = [1, 1]} : vector<16x96xf32> to vector<16x4xf32>
    %52 = vector.shape_cast %51 : vector<16x4xf32> to vector<2x8x4xf32>
    %53 = vector.extract_strided_slice %6 {offsets = [0, 88], sizes = [16, 4], strides = [1, 1]} : vector<16x96xf32> to vector<16x4xf32>
    %54 = vector.shape_cast %53 : vector<16x4xf32> to vector<2x8x4xf32>
    %55 = vector.extract_strided_slice %6 {offsets = [0, 92], sizes = [16, 4], strides = [1, 1]} : vector<16x96xf32> to vector<16x4xf32>
    %56 = vector.shape_cast %55 : vector<16x4xf32> to vector<2x8x4xf32>
    %57 = tpu.concatenate %42, %44, %46, %48, %50, %52, %54, %56 in 0 : vector<2x8x4xf32>, vector<2x8x4xf32>, vector<2x8x4xf32>, vector<2x8x4xf32>, vector<2x8x4xf32>, vector<2x8x4xf32>, vector<2x8x4xf32>, vector<2x8x4xf32> -> vector<16x8x4xf32>
    %58 = arith.truncf %23 : vector<16x8x4xf32> to vector<16x8x4xbf16>
    %59 = arith.truncf %40 : vector<16x8x4xf32> to vector<16x8x4xbf16>
    %60 = arith.truncf %57 : vector<16x8x4xf32> to vector<16x8x4xbf16>
    "tpu.trace_start"() <{level = 10 : i32, message = "bld,bmd->blm"}> : () -> ()
    %cst_5 = arith.constant dense<0.000000e+00> : vector<16x8x8xf32>
    %61 = tpu.matmul %58, %59, %cst_5 {dimension_numbers = #tpu.dot_dimension_numbers<[2], [2], [1], [1], [0, 0, 0, 1, 1, 1], [0], [0]>} : vector<16x8x4xbf16>, vector<16x8x4xbf16>, vector<16x8x8xf32> -> vector<16x8x8xf32>
    "tpu.trace_stop"() : () -> ()
    %cst_6 = arith.constant dense<0xFF800000> : vector<16x8xf32>
    %62 = vector.multi_reduction <maximumf>, %61, %cst_6 [2] : vector<16x8x8xf32> to vector<16x8xf32>
    %63 = vector.shape_cast %62 : vector<16x8xf32> to vector<16x8x1xf32>
    %64 = vector.broadcast %63 : vector<16x8x1xf32> to vector<16x8x8xf32>
    %65 = arith.subf %61, %64 : vector<16x8x8xf32>
    %66 = math.exp %65 : vector<16x8x8xf32>
    %cst_7 = arith.constant dense<0.000000e+00> : vector<16x8xf32>
    %67 = vector.multi_reduction <add>, %66, %cst_7 [2] : vector<16x8x8xf32> to vector<16x8xf32>
    %68 = vector.shape_cast %67 : vector<16x8xf32> to vector<16x8x1xf32>
    %69 = tpu.reciprocal %68 {approx = true} : vector<16x8x1xf32> -> vector<16x8x1xf32>
    %70 = vector.broadcast %69 : vector<16x8x1xf32> to vector<16x8x8xf32>
    %71 = arith.mulf %66, %70 : vector<16x8x8xf32>
    %72 = arith.truncf %71 : vector<16x8x8xf32> to vector<16x8x8xbf16>
    "tpu.trace_start"() <{level = 10 : i32, message = "blm,bmd->bld"}> : () -> ()
    %cst_8 = arith.constant dense<0.000000e+00> : vector<16x8x4xf32>
    %73 = tpu.matmul %72, %60, %cst_8 {dimension_numbers = #tpu.dot_dimension_numbers<[2], [1], [1], [2], [0, 0, 0, 1, 1, 2], [0], [0]>} : vector<16x8x8xbf16>, vector<16x8x4xbf16>, vector<16x8x4xf32> -> vector<16x8x4xf32>
    "tpu.trace_stop"() : () -> ()
    %74 = vector.shape_cast %73 : vector<16x8x4xf32> to vector<8x16x4xf32>
    %75 = vector.extract_strided_slice %74 {offsets = [0, 0, 0], sizes = [1, 16, 4], strides = [1, 1, 1]} : vector<8x16x4xf32> to vector<1x16x4xf32>
    %76 = vector.shape_cast %75 : vector<1x16x4xf32> to vector<16x4xf32>
    %c0_9 = arith.constant 0 : index
    %c0_10 = arith.constant 0 : index
    %77 = vector.load %arg7[%c0_9, %c0_10] : memref<16x32xf32, #tpu.memory_space<vmem>>, vector<16x4xf32>
    tpu.vector_store %arg7[%c0_9, %c0_10], %76 {strides = array<i32>} : memref<16x32xf32, #tpu.memory_space<vmem>>, vector<16x4xf32>,
    %78 = vector.extract_strided_slice %74 {offsets = [1, 0, 0], sizes = [1, 16, 4], strides = [1, 1, 1]} : vector<8x16x4xf32> to vector<1x16x4xf32>
    %79 = vector.shape_cast %78 : vector<1x16x4xf32> to vector<16x4xf32>
    %c0_11 = arith.constant 0 : index
    %c4 = arith.constant 4 : index
    %80 = vector.load %arg7[%c0_11, %c4] : memref<16x32xf32, #tpu.memory_space<vmem>>, vector<16x4xf32>
    tpu.vector_store %arg7[%c0_11, %c4], %79 {strides = array<i32>} : memref<16x32xf32, #tpu.memory_space<vmem>>, vector<16x4xf32>,
    %81 = vector.extract_strided_slice %74 {offsets = [2, 0, 0], sizes = [1, 16, 4], strides = [1, 1, 1]} : vector<8x16x4xf32> to vector<1x16x4xf32>
    %82 = vector.shape_cast %81 : vector<1x16x4xf32> to vector<16x4xf32>
    %c0_12 = arith.constant 0 : index
    %c8 = arith.constant 8 : index
    %83 = vector.load %arg7[%c0_12, %c8] : memref<16x32xf32, #tpu.memory_space<vmem>>, vector<16x4xf32>
    tpu.vector_store %arg7[%c0_12, %c8], %82 {strides = array<i32>} : memref<16x32xf32, #tpu.memory_space<vmem>>, vector<16x4xf32>,
    %84 = vector.extract_strided_slice %74 {offsets = [3, 0, 0], sizes = [1, 16, 4], strides = [1, 1, 1]} : vector<8x16x4xf32> to vector<1x16x4xf32>
    %85 = vector.shape_cast %84 : vector<1x16x4xf32> to vector<16x4xf32>
    %c0_13 = arith.constant 0 : index
    %c12 = arith.constant 12 : index
    %86 = vector.load %arg7[%c0_13, %c12] : memref<16x32xf32, #tpu.memory_space<vmem>>, vector<16x4xf32>
    tpu.vector_store %arg7[%c0_13, %c12], %85 {strides = array<i32>} : memref<16x32xf32, #tpu.memory_space<vmem>>, vector<16x4xf32>,
    %87 = vector.extract_strided_slice %74 {offsets = [4, 0, 0], sizes = [1, 16, 4], strides = [1, 1, 1]} : vector<8x16x4xf32> to vector<1x16x4xf32>
    %88 = vector.shape_cast %87 : vector<1x16x4xf32> to vector<16x4xf32>
    %c0_14 = arith.constant 0 : index
    %c16 = arith.constant 16 : index
    %89 = vector.load %arg7[%c0_14, %c16] : memref<16x32xf32, #tpu.memory_space<vmem>>, vector<16x4xf32>
    tpu.vector_store %arg7[%c0_14, %c16], %88 {strides = array<i32>} : memref<16x32xf32, #tpu.memory_space<vmem>>, vector<16x4xf32>,
    %90 = vector.extract_strided_slice %74 {offsets = [5, 0, 0], sizes = [1, 16, 4], strides = [1, 1, 1]} : vector<8x16x4xf32> to vector<1x16x4xf32>
    %91 = vector.shape_cast %90 : vector<1x16x4xf32> to vector<16x4xf32>
    %c0_15 = arith.constant 0 : index
    %c20 = arith.constant 20 : index
    %92 = vector.load %arg7[%c0_15, %c20] : memref<16x32xf32, #tpu.memory_space<vmem>>, vector<16x4xf32>
    tpu.vector_store %arg7[%c0_15, %c20], %91 {strides = array<i32>} : memref<16x32xf32, #tpu.memory_space<vmem>>, vector<16x4xf32>,
    %93 = vector.extract_strided_slice %74 {offsets = [6, 0, 0], sizes = [1, 16, 4], strides = [1, 1, 1]} : vector<8x16x4xf32> to vector<1x16x4xf32>
    %94 = vector.shape_cast %93 : vector<1x16x4xf32> to vector<16x4xf32>
    %c0_16 = arith.constant 0 : index
    %c24 = arith.constant 24 : index
    %95 = vector.load %arg7[%c0_16, %c24] : memref<16x32xf32, #tpu.memory_space<vmem>>, vector<16x4xf32>
    tpu.vector_store %arg7[%c0_16, %c24], %94 {strides = array<i32>} : memref<16x32xf32, #tpu.memory_space<vmem>>, vector<16x4xf32>,
    %96 = vector.extract_strided_slice %74 {offsets = [7, 0, 0], sizes = [1, 16, 4], strides = [1, 1, 1]} : vector<8x16x4xf32> to vector<1x16x4xf32>
    %97 = vector.shape_cast %96 : vector<1x16x4xf32> to vector<16x4xf32>
    %c0_17 = arith.constant 0 : index
    %c28 = arith.constant 28 : index
    %98 = vector.load %arg7[%c0_17, %c28] : memref<16x32xf32, #tpu.memory_space<vmem>>, vector<16x4xf32>
    tpu.vector_store %arg7[%c0_17, %c28], %97 {strides = array<i32>} : memref<16x32xf32, #tpu.memory_space<vmem>>, vector<16x4xf32>,
    %c0_18 = arith.constant 0 : index
    %c0_19 = arith.constant 0 : index
    %99 = vector.load %arg7[%c0_18, %c0_19] : memref<16x32xf32, #tpu.memory_space<vmem>>, vector<16x32xf32>
    %100 = arith.truncf %99 : vector<16x32xf32> to vector<16x32xbf16>
    %c0_20 = arith.constant 0 : index
    %c0_21 = arith.constant 0 : index
    %101 = vector.load %arg4[%c0_20, %c0_21] : memref<32x32xbf16, #tpu.memory_space<vmem>>, vector<32x32xbf16>
    %cst_22 = arith.constant dense<0.000000e+00> : vector<16x32xf32>
    %102 = tpu.matmul %100, %101, %cst_22 {dimension_numbers = #tpu.dot_dimension_numbers<[1], [0], [0], [1], [0, 0, 1, 1], [], []>} : vector<16x32xbf16>, vector<32x32xbf16>, vector<16x32xf32> -> vector<16x32xf32>
    %c0_23 = arith.constant 0 : index
    %c0_24 = arith.constant 0 : index
    %103 = vector.load %arg5[%c0_23, %c0_24] : memref<1x32xf32, #tpu.memory_space<vmem>>, vector<1x32xf32>
    %104 = vector.broadcast %103 : vector<1x32xf32> to vector<16x32xf32>
    %105 = arith.addf %102, %104 : vector<16x32xf32>
    %c0_25 = arith.constant 0 : index
    %c0_26 = arith.constant 0 : index
    %106 = vector.load %arg6[%c0_25, %c0_26] : memref<16x32xf32, #tpu.memory_space<vmem>>, vector<16x32xf32>
    tpu.vector_store %arg6[%c0_25, %c0_26], %105 {strides = array<i32>} : memref<16x32xf32, #tpu.memory_space<vmem>>, vector<16x32xf32>,
    return
  }
  func.func @transform_0(%arg0: i32) -> (i32, i32) {
    %c0_i32 = arith.constant 0 : i32
    %c0_i32_0 = arith.constant 0 : i32
    %c0_i32_1 = arith.constant 0 : i32
    return %c0_i32, %c0_i32_0 : i32, i32
  }
  func.func @transform_1(%arg0: i32) -> (i32, i32) {
    %c0_i32 = arith.constant 0 : i32
    %c0_i32_0 = arith.constant 0 : i32
    %c0_i32_1 = arith.constant 0 : i32
    return %c0_i32, %c0_i32_0 : i32, i32
  }
  func.func @transform_2(%arg0: i32) -> (i32, i32) {
    %c0_i32 = arith.constant 0 : i32
    %c0_i32_0 = arith.constant 0 : i32
    %c0_i32_1 = arith.constant 0 : i32
    return %c0_i32, %c0_i32_0 : i32, i32
  }
  func.func @transform_3(%arg0: i32) -> (i32, i32) {
    %c0_i32 = arith.constant 0 : i32
    %c0_i32_0 = arith.constant 0 : i32
    %c0_i32_1 = arith.constant 0 : i32
    return %c0_i32, %c0_i32_0 : i32, i32
  }
  func.func @transform_4(%arg0: i32) -> (i32, i32) {
    %c0_i32 = arith.constant 0 : i32
    %c0_i32_0 = arith.constant 0 : i32
    %c0_i32_1 = arith.constant 0 : i32
    return %c0_i32, %c0_i32_0 : i32, i32
  }
  func.func @transform_5(%arg0: i32) -> (i32, i32) {
    %c0_i32 = arith.constant 0 : i32
    %c0_i32_0 = arith.constant 0 : i32
    %c0_i32_1 = arith.constant 0 : i32
    return %c0_i32, %c0_i32_0 : i32, i32
  }
}

</mosaic_0001>

<llo_original>
// kernel: tpu_custom_call.1
$region0: #{tpu_custom_call.1}
  #allocation0 [shape = 'u32[]', space=smem, size = 0x4, offset = 0x4, fixed_abs, tag = 'smem constant byte address 0x4 - core index']
  #allocation1 [shape = 'u32[72,128]{1,0:T(1,128)}', space=vmem, size = 0x9000, scoped, tag = 'internal scratch']
  #allocation2 [shape = 'f32[16,32]{1,0:T(8,128)}', space=vmem, size = 0x2000, scoped, tag = 'scratch operand']
  %s0 = inlined_call_operand.hbm [shape: f32[16,32], index: 0, kind: input, shape index: {}]
  %s1 = inlined_call_operand.hbm [shape: bf16[32,96], index: 1, kind: input, shape index: {}]
  %s2 = inlined_call_operand.vmem [shape: f32[1,96], index: 2, kind: input, shape index: {}]
  %s3 = inlined_call_operand.hbm [shape: bf16[32,32], index: 3, kind: input, shape index: {}]
  %s4 = inlined_call_operand.vmem [shape: f32[1,32], index: 4, kind: input, shape index: {}]
  %s5 = inlined_call_operand.hbm [shape: f32[16,32], index: 5, kind: output, shape index: {}]
  %s6 = sld [smem:[#allocation0]]
  $region42: #{tpu_custom_call.1} parent=0
    _
  %s8 = ssub.s32 1, %s6
  %s9 = scalar_select 0, %s8, %s6
  $region1: #{tpu_custom_call.1} parent=0
    #allocation3 [shape = 'u8[8192]{0}', space=vmem, size = 0x2000, scoped, tag = 'input window, operand 0, single buffered']
    #allocation4 [shape = 's32[1]{0}', space=sflag, size = 0x4, scoped, tag = 'scoped memory for tpu_custom_call.1']
    #allocation5 [shape = 's32[1]{0}', space=sflag, size = 0x4, scoped, tag = 'scoped memory for tpu_custom_call.1']
    #allocation6 [shape = 'u8[8192]{0}', space=vmem, size = 0x2000, scoped, tag = 'input window, operand 1, single buffered']
    #allocation7 [shape = 's32[1]{0}', space=sflag, size = 0x4, scoped, tag = 'scoped memory for tpu_custom_call.1']
    #allocation8 [shape = 'u8[8192]{0}', space=vmem, size = 0x2000, scoped, tag = 'input window, operand 3, single buffered']
    #allocation9 [shape = 'u8[8192]{0}', space=vmem, size = 0x2000, scoped, tag = 'output window, operand 0, single buffered']
    %10 = vsyncpa [#allocation4], 0
    %11 = vsyncpa [#allocation7], 0
    %12 = vsyncpa [#allocation5], 0
    // Predicated region
    $region2: #{tpu_custom_call.1} parent=1 // pred_check
      _
    $region3: #{tpu_custom_call.1} parent=1 // pred_check_branch
      %14 = sbr.rel (0) target = $region5
    $region4: #{tpu_custom_call.1} parent=1 // pred_region
      %16 = vsyncadd [#allocation4], 0
      %s17 = sshll.u32 %s0, 4
      %s18 = int_to_ptr.hbm [resolvable:$true] %s17
      %s19 = sshll.u32 [#allocation3], 4
      %s20 = int_to_ptr.vmem [resolvable:$true] %s19
      %25 = dma.hbm_to_vmem [thread:$0]  %s18, 256, %s20, [#allocation4], 128, 128, 8
    $region5: #{tpu_custom_call.1} parent=1 // pred_fallthru
      _
    // Predicated region
    $region6: #{tpu_custom_call.1} parent=1 // pred_check
      _
    $region7: #{tpu_custom_call.1} parent=1 // pred_check_branch
      %27 = sbr.rel (0) target = $region9
    $region8: #{tpu_custom_call.1} parent=1 // pred_region
      %29 = vsyncadd [#allocation7], 0
      %s30 = sshll.u32 %s1, 4
      %s31 = int_to_ptr.hbm [resolvable:$true] %s30
      %s32 = sshll.u32 [#allocation6], 4
      %s33 = int_to_ptr.vmem [resolvable:$true] %s32
      %38 = dma.hbm_to_vmem [thread:$0]  %s31, 256, %s33, [#allocation7], 64, 64, 4
    $region9: #{tpu_custom_call.1} parent=1 // pred_fallthru
      _
    // Predicated region
    $region10: #{tpu_custom_call.1} parent=1 // pred_check
      _
    $region11: #{tpu_custom_call.1} parent=1 // pred_check_branch
      %40 = sbr.rel (0) target = $region13
    $region12: #{tpu_custom_call.1} parent=1 // pred_region
      _
    $region13: #{tpu_custom_call.1} parent=1 // pred_fallthru
      _
    // Predicated region
    $region14: #{tpu_custom_call.1} parent=1 // pred_check
      _
    $region15: #{tpu_custom_call.1} parent=1 // pred_check_branch
      %42 = sbr.rel (0) target = $region17
    $region16: #{tpu_custom_call.1} parent=1 // pred_region
      %44 = vsyncadd [#allocation7], 0
      %s45 = sshll.u32 %s3, 4
      %s46 = int_to_ptr.hbm [resolvable:$true] %s45
      %s47 = sshll.u32 [#allocation8], 4
      %s48 = int_to_ptr.vmem [resolvable:$true] %s47
      %53 = dma.hbm_to_vmem [thread:$0]  %s46, 256, %s48, [#allocation7], 64, 64, 4
    $region17: #{tpu_custom_call.1} parent=1 // pred_fallthru
      _
    // Predicated region
    $region18: #{tpu_custom_call.1} parent=1 // pred_check
      _
    $region19: #{tpu_custom_call.1} parent=1 // pred_check_branch
      %55 = sbr.rel (0) target = $region21
    $region20: #{tpu_custom_call.1} parent=1 // pred_region
      _
    $region21: #{tpu_custom_call.1} parent=1 // pred_fallthru
      _
    // Predicated region
    $region22: #{tpu_custom_call.1} parent=1 // pred_check
      _
    $region23: #{tpu_custom_call.1} parent=1 // pred_check_branch
      %57 = sbr.rel (0) target = $region25
    $region24: #{tpu_custom_call.1} parent=1 // pred_region
      %59 = dma.done [#allocation4], 256
    $region25: #{tpu_custom_call.1} parent=1 // pred_fallthru
      _
    // Predicated region
    $region26: #{tpu_custom_call.1} parent=1 // pred_check
      _
    $region27: #{tpu_custom_call.1} parent=1 // pred_check_branch
      %61 = sbr.rel (0) target = $region29
    $region28: #{tpu_custom_call.1} parent=1 // pred_region
      %63 = dma.done [#allocation7], 256
    $region29: #{tpu_custom_call.1} parent=1 // pred_fallthru
      _
    // Predicated region
    $region30: #{tpu_custom_call.1} parent=1 // pred_check
      _
    $region31: #{tpu_custom_call.1} parent=1 // pred_check_branch
      %65 = sbr.rel (0) target = $region33
    $region32: #{tpu_custom_call.1} parent=1 // pred_region
      %67 = dma.done [#allocation7], 256
    $region33: #{tpu_custom_call.1} parent=1 // pred_fallthru
      _
    %v69 = vld [vmem:[#allocation3] sm:$0xff]
    %v70 = vld [vmem:[#allocation3 + $0x8] sm:$0xff]
    %v71 = vpack.c.bf16 %v70, %v69
    %v72 = vld [vmem:[#allocation6] sm:$0xf]
    %v73 = vld [vmem:[#allocation6 + $0x4] sm:$0xf]
    %v74 = vld [vmem:[#allocation6 + $0x8] sm:$0xf]
    %v75 = vld [vmem:[#allocation6 + $0xc] sm:$0xf]
    %v76 = vld [vmem:[%s2] sm:$0x1]
    %v78 = vperm.slane %v76, 0
    %v84 = vunpack.c.l.b16 %v72
    %v85 = vunpack.c.l.b16 %v73
    %v86 = vunpack.c.l.b16 %v74
    %v87 = vunpack.c.l.b16 %v75
    %v88 = vpack.c.b16 %v85, %v84
    %v89 = vpack.c.b16 %v87, %v86
    %vm92 = vcmask 261120
    %v94 = vsel %vm92, %v71, 0
    %96 = vmatpush.bf16.msra.mxu0 0
    %97 = vmatpush.bf16.msra.mxu0 0
    %98 = vmatpush.bf16.msra.mxu0 0
    %99 = vmatpush.bf16.msra.mxu0 0
    %100 = vmatpush.bf16.msra.mxu0 0
    %101 = vmatpush.bf16.msra.mxu0 0
    %102 = vmatpush.bf16.msra.mxu0 %v89
    %103 = vmatpush.bf16.msra.mxu0 %v88
    %104 = vmatmul.bf16.gmra.mxu0 %v94
    %v105 = vpop.f32.mrf.mxu0
    %v106 = vadd.f32 %v78, %v105
    %v107 = vpop.f32.mrf.mxu0
    %v108 = vadd.f32 %v78, %v107
    %109 = vdwg.mxu0
    %112 = vrot.lane.b32.xlu0 %v106, 124
    %v113 = vpop.permute.xlu0 %112
    %114 = vrot.lane.b32.xlu0 %v108, 124
    %v115 = vpop.permute.xlu0 %114
    %118 = vrot.lane.b32.xlu0 %v106, 120
    %v119 = vpop.permute.xlu0 %118
    %120 = vrot.lane.b32.xlu0 %v108, 120
    %v121 = vpop.permute.xlu0 %120
    %124 = vrot.lane.b32.xlu0 %v106, 116
    %v125 = vpop.permute.xlu0 %124
    %126 = vrot.lane.b32.xlu0 %v108, 116
    %v127 = vpop.permute.xlu0 %126
    %130 = vrot.lane.b32.xlu0 %v106, 112
    %v131 = vpop.permute.xlu0 %130
    %132 = vrot.lane.b32.xlu0 %v108, 112
    %v133 = vpop.permute.xlu0 %132
    %136 = vrot.lane.b32.xlu0 %v106, 108
    %v137 = vpop.permute.xlu0 %136
    %138 = vrot.lane.b32.xlu0 %v108, 108
    %v139 = vpop.permute.xlu0 %138
    %142 = vrot.lane.b32.xlu0 %v106, 104
    %v143 = vpop.permute.xlu0 %142
    %144 = vrot.lane.b32.xlu0 %v108, 104
    %v145 = vpop.permute.xlu0 %144
    %148 = vrot.lane.b32.xlu0 %v106, 100
    %v149 = vpop.permute.xlu0 %148
    %150 = vrot.lane.b32.xlu0 %v108, 100
    %v151 = vpop.permute.xlu0 %150
    %v154 = vpack.c.bf16 %v106, %v106
    %v155 = vpack.c.bf16 %v108, %v108
    %v156 = vpack.c.bf16 %v113, %v113
    %v157 = vpack.c.bf16 %v115, %v115
    %v158 = vpack.c.bf16 %v119, %v119
    %v159 = vpack.c.bf16 %v121, %v121
    %v160 = vpack.c.bf16 %v125, %v125
    %v161 = vpack.c.bf16 %v127, %v127
    %v162 = vpack.c.bf16 %v131, %v131
    %v163 = vpack.c.bf16 %v133, %v133
    %v164 = vpack.c.bf16 %v137, %v137
    %v165 = vpack.c.bf16 %v139, %v139
    %v166 = vpack.c.bf16 %v143, %v143
    %v167 = vpack.c.bf16 %v145, %v145
    %v168 = vpack.c.bf16 %v149, %v149
    %v169 = vpack.c.bf16 %v151, %v151
    %v171 = vunpack.c.l.b16 %v154
    %v172 = vpack.c.b16 %v171, %v171
    %173 = vrot.lane.b32.xlu0 %v172, 96
    %v174 = vpop.permute.xlu0 %173
    %vm175 = vcmask 31744
    %v177 = vsel %vm175, %v154, 0
    %v180 = vsel %vm175, %v174, 0
    %182 = vmatpush.bf16.xpose.msra.mxu0 0
    %183 = vmatpush.bf16.xpose.msra.mxu0 0
    %184 = vmatpush.bf16.xpose.msra.mxu0 0
    %185 = vmatpush.bf16.xpose.msra.mxu0 0
    %186 = vmatpush.bf16.xpose.msra.mxu0 0
    %187 = vmatpush.bf16.xpose.msra.mxu0 0
    %188 = vmatpush.bf16.xpose.msra.mxu0 0
    %189 = vmatpush.bf16.xpose.msra.mxu0 %v180
    %190 = vmatmul.bf16.gmra.mxu0 %v177
    %v191 = vpop.f32.mrf.mxu0
    %v192 = vadd.f32 0.0, %v191
    %v193 = vpop.f32.mrf.mxu0
    %194 = vdwg.mxu0
    %v196 = vunpack.c.l.b16 %v155
    %v197 = vpack.c.b16 %v196, %v196
    %198 = vrot.lane.b32.xlu0 %v197, 96
    %v199 = vpop.permute.xlu0 %198
    %v201 = vsel %vm175, %v155, 0
    %v204 = vsel %vm175, %v199, 0
    %206 = vmatpush.bf16.xpose.msra.mxu0 0
    %207 = vmatpush.bf16.xpose.msra.mxu0 0
    %208 = vmatpush.bf16.xpose.msra.mxu0 0
    %209 = vmatpush.bf16.xpose.msra.mxu0 0
    %210 = vmatpush.bf16.xpose.msra.mxu0 0
    %211 = vmatpush.bf16.xpose.msra.mxu0 0
    %212 = vmatpush.bf16.xpose.msra.mxu0 0
    %213 = vmatpush.bf16.xpose.msra.mxu0 %v204
    %214 = vmatmul.bf16.gmra.mxu0 %v201
    %v215 = vpop.f32.mrf.mxu0
    %v216 = vadd.f32 0.0, %v215
    %v217 = vpop.f32.mrf.mxu0
    %218 = vdwg.mxu0
    %v220 = vunpack.c.l.b16 %v156
    %v221 = vpack.c.b16 %v220, %v220
    %222 = vrot.lane.b32.xlu0 %v221, 96
    %v223 = vpop.permute.xlu0 %222
    %v225 = vsel %vm175, %v156, 0
    %v228 = vsel %vm175, %v223, 0
    %230 = vmatpush.bf16.xpose.msra.mxu0 0
    %231 = vmatpush.bf16.xpose.msra.mxu0 0
    %232 = vmatpush.bf16.xpose.msra.mxu0 0
    %233 = vmatpush.bf16.xpose.msra.mxu0 0
    %234 = vmatpush.bf16.xpose.msra.mxu0 0
    %235 = vmatpush.bf16.xpose.msra.mxu0 0
    %236 = vmatpush.bf16.xpose.msra.mxu0 0
    %237 = vmatpush.bf16.xpose.msra.mxu0 %v228
    %238 = vmatmul.bf16.gmra.mxu0 %v225
    %v239 = vpop.f32.mrf.mxu0
    %v240 = vadd.f32 0.0, %v239
    %v241 = vpop.f32.mrf.mxu0
    %242 = vdwg.mxu0
    %v244 = vunpack.c.l.b16 %v157
    %v245 = vpack.c.b16 %v244, %v244
    %246 = vrot.lane.b32.xlu0 %v245, 96
    %v247 = vpop.permute.xlu0 %246
    %v249 = vsel %vm175, %v157, 0
    %v252 = vsel %vm175, %v247, 0
    %254 = vmatpush.bf16.xpose.msra.mxu0 0
    %255 = vmatpush.bf16.xpose.msra.mxu0 0
    %256 = vmatpush.bf16.xpose.msra.mxu0 0
    %257 = vmatpush.bf16.xpose.msra.mxu0 0
    %258 = vmatpush.bf16.xpose.msra.mxu0 0
    %259 = vmatpush.bf16.xpose.msra.mxu0 0
    %260 = vmatpush.bf16.xpose.msra.mxu0 0
    %261 = vmatpush.bf16.xpose.msra.mxu0 %v252
    %262 = vmatmul.bf16.gmra.mxu0 %v249
    %v263 = vpop.f32.mrf.mxu0
    %v264 = vadd.f32 0.0, %v263
    %v265 = vpop.f32.mrf.mxu0
    %266 = vdwg.mxu0
    %v268 = vunpack.c.l.b16 %v158
    %v269 = vpack.c.b16 %v268, %v268
    %270 = vrot.lane.b32.xlu0 %v269, 96
    %v271 = vpop.permute.xlu0 %270
    %v273 = vsel %vm175, %v158, 0
    %v276 = vsel %vm175, %v271, 0
    %278 = vmatpush.bf16.xpose.msra.mxu0 0
    %279 = vmatpush.bf16.xpose.msra.mxu0 0
    %280 = vmatpush.bf16.xpose.msra.mxu0 0
    %281 = vmatpush.bf16.xpose.msra.mxu0 0
    %282 = vmatpush.bf16.xpose.msra.mxu0 0
    %283 = vmatpush.bf16.xpose.msra.mxu0 0
    %284 = vmatpush.bf16.xpose.msra.mxu0 0
    %285 = vmatpush.bf16.xpose.msra.mxu0 %v276
    %286 = vmatmul.bf16.gmra.mxu0 %v273
    %v287 = vpop.f32.mrf.mxu0
    %v288 = vadd.f32 0.0, %v287
    %v289 = vpop.f32.mrf.mxu0
    %290 = vdwg.mxu0
    %v292 = vunpack.c.l.b16 %v159
    %v293 = vpack.c.b16 %v292, %v292
    %294 = vrot.lane.b32.xlu0 %v293, 96
    %v295 = vpop.permute.xlu0 %294
    %v297 = vsel %vm175, %v159, 0
    %v300 = vsel %vm175, %v295, 0
    %302 = vmatpush.bf16.xpose.msra.mxu0 0
    %303 = vmatpush.bf16.xpose.msra.mxu0 0
    %304 = vmatpush.bf16.xpose.msra.mxu0 0
    %305 = vmatpush.bf16.xpose.msra.mxu0 0
    %306 = vmatpush.bf16.xpose.msra.mxu0 0
    %307 = vmatpush.bf16.xpose.msra.mxu0 0
    %308 = vmatpush.bf16.xpose.msra.mxu0 0
    %309 = vmatpush.bf16.xpose.msra.mxu0 %v300
    %310 = vmatmul.bf16.gmra.mxu0 %v297
    %v311 = vpop.f32.mrf.mxu0
    %v312 = vadd.f32 0.0, %v311
    %v313 = vpop.f32.mrf.mxu0
    %314 = vdwg.mxu0
    %v316 = vunpack.c.l.b16 %v160
    %v317 = vpack.c.b16 %v316, %v316
    %318 = vrot.lane.b32.xlu0 %v317, 96
    %v319 = vpop.permute.xlu0 %318
    %v321 = vsel %vm175, %v160, 0
    %v324 = vsel %vm175, %v319, 0
    %326 = vmatpush.bf16.xpose.msra.mxu0 0
    %327 = vmatpush.bf16.xpose.msra.mxu0 0
    %328 = vmatpush.bf16.xpose.msra.mxu0 0
    %329 = vmatpush.bf16.xpose.msra.mxu0 0
    %330 = vmatpush.bf16.xpose.msra.mxu0 0
    %331 = vmatpush.bf16.xpose.msra.mxu0 0
    %332 = vmatpush.bf16.xpose.msra.mxu0 0
    %333 = vmatpush.bf16.xpose.msra.mxu0 %v324
    %334 = vmatmul.bf16.gmra.mxu0 %v321
    %v335 = vpop.f32.mrf.mxu0
    %v336 = vadd.f32 0.0, %v335
    %v337 = vpop.f32.mrf.mxu0
    %338 = vdwg.mxu0
    %v340 = vunpack.c.l.b16 %v161
    %v341 = vpack.c.b16 %v340, %v340
    %342 = vrot.lane.b32.xlu0 %v341, 96
    %v343 = vpop.permute.xlu0 %342
    %v345 = vsel %vm175, %v161, 0
    %v348 = vsel %vm175, %v343, 0
    %350 = vmatpush.bf16.xpose.msra.mxu0 0
    %351 = vmatpush.bf16.xpose.msra.mxu0 0
    %352 = vmatpush.bf16.xpose.msra.mxu0 0
    %353 = vmatpush.bf16.xpose.msra.mxu0 0
    %354 = vmatpush.bf16.xpose.msra.mxu0 0
    %355 = vmatpush.bf16.xpose.msra.mxu0 0
    %356 = vmatpush.bf16.xpose.msra.mxu0 0
    %357 = vmatpush.bf16.xpose.msra.mxu0 %v348
    %358 = vmatmul.bf16.gmra.mxu0 %v345
    %v359 = vpop.f32.mrf.mxu0
    %v360 = vadd.f32 0.0, %v359
    %v361 = vpop.f32.mrf.mxu0
    %362 = vdwg.mxu0
    %v364 = vunpack.c.l.b16 %v162
    %v365 = vpack.c.b16 %v364, %v364
    %366 = vrot.lane.b32.xlu0 %v365, 96
    %v367 = vpop.permute.xlu0 %366
    %v369 = vsel %vm175, %v162, 0
    %v372 = vsel %vm175, %v367, 0
    %374 = vmatpush.bf16.xpose.msra.mxu0 0
    %375 = vmatpush.bf16.xpose.msra.mxu0 0
    %376 = vmatpush.bf16.xpose.msra.mxu0 0
    %377 = vmatpush.bf16.xpose.msra.mxu0 0
    %378 = vmatpush.bf16.xpose.msra.mxu0 0
    %379 = vmatpush.bf16.xpose.msra.mxu0 0
    %380 = vmatpush.bf16.xpose.msra.mxu0 0
    %381 = vmatpush.bf16.xpose.msra.mxu0 %v372
    %382 = vmatmul.bf16.gmra.mxu0 %v369
    %v383 = vpop.f32.mrf.mxu0
    %v384 = vadd.f32 0.0, %v383
    %v385 = vpop.f32.mrf.mxu0
    %386 = vdwg.mxu0
    %v388 = vunpack.c.l.b16 %v163
    %v389 = vpack.c.b16 %v388, %v388
    %390 = vrot.lane.b32.xlu0 %v389, 96
    %v391 = vpop.permute.xlu0 %390
    %v393 = vsel %vm175, %v163, 0
    %v396 = vsel %vm175, %v391, 0
    %398 = vmatpush.bf16.xpose.msra.mxu0 0
    %399 = vmatpush.bf16.xpose.msra.mxu0 0
    %400 = vmatpush.bf16.xpose.msra.mxu0 0
    %401 = vmatpush.bf16.xpose.msra.mxu0 0
    %402 = vmatpush.bf16.xpose.msra.mxu0 0
    %403 = vmatpush.bf16.xpose.msra.mxu0 0
    %404 = vmatpush.bf16.xpose.msra.mxu0 0
    %405 = vmatpush.bf16.xpose.msra.mxu0 %v396
    %406 = vmatmul.bf16.gmra.mxu0 %v393
    %v407 = vpop.f32.mrf.mxu0
    %v408 = vadd.f32 0.0, %v407
    %v409 = vpop.f32.mrf.mxu0
    %410 = vdwg.mxu0
    %v412 = vunpack.c.l.b16 %v164
    %v413 = vpack.c.b16 %v412, %v412
    %414 = vrot.lane.b32.xlu0 %v413, 96
    %v415 = vpop.permute.xlu0 %414
    %v417 = vsel %vm175, %v164, 0
    %v420 = vsel %vm175, %v415, 0
    %422 = vmatpush.bf16.xpose.msra.mxu0 0
    %423 = vmatpush.bf16.xpose.msra.mxu0 0
    %424 = vmatpush.bf16.xpose.msra.mxu0 0
    %425 = vmatpush.bf16.xpose.msra.mxu0 0
    %426 = vmatpush.bf16.xpose.msra.mxu0 0
    %427 = vmatpush.bf16.xpose.msra.mxu0 0
    %428 = vmatpush.bf16.xpose.msra.mxu0 0
    %429 = vmatpush.bf16.xpose.msra.mxu0 %v420
    %430 = vmatmul.bf16.gmra.mxu0 %v417
    %v431 = vpop.f32.mrf.mxu0
    %v432 = vadd.f32 0.0, %v431
    %v433 = vpop.f32.mrf.mxu0
    %434 = vdwg.mxu0
    %v436 = vunpack.c.l.b16 %v165
    %v437 = vpack.c.b16 %v436, %v436
    %438 = vrot.lane.b32.xlu0 %v437, 96
    %v439 = vpop.permute.xlu0 %438
    %v441 = vsel %vm175, %v165, 0
    %v444 = vsel %vm175, %v439, 0
    %446 = vmatpush.bf16.xpose.msra.mxu0 0
    %447 = vmatpush.bf16.xpose.msra.mxu0 0
    %448 = vmatpush.bf16.xpose.msra.mxu0 0
    %449 = vmatpush.bf16.xpose.msra.mxu0 0
    %450 = vmatpush.bf16.xpose.msra.mxu0 0
    %451 = vmatpush.bf16.xpose.msra.mxu0 0
    %452 = vmatpush.bf16.xpose.msra.mxu0 0
    %453 = vmatpush.bf16.xpose.msra.mxu0 %v444
    %454 = vmatmul.bf16.gmra.mxu0 %v441
    %v455 = vpop.f32.mrf.mxu0
    %v456 = vadd.f32 0.0, %v455
    %v457 = vpop.f32.mrf.mxu0
    %458 = vdwg.mxu0
    %v460 = vunpack.c.l.b16 %v166
    %v461 = vpack.c.b16 %v460, %v460
    %462 = vrot.lane.b32.xlu0 %v461, 96
    %v463 = vpop.permute.xlu0 %462
    %v465 = vsel %vm175, %v166, 0
    %v468 = vsel %vm175, %v463, 0
    %470 = vmatpush.bf16.xpose.msra.mxu0 0
    %471 = vmatpush.bf16.xpose.msra.mxu0 0
    %472 = vmatpush.bf16.xpose.msra.mxu0 0
    %473 = vmatpush.bf16.xpose.msra.mxu0 0
    %474 = vmatpush.bf16.xpose.msra.mxu0 0
    %475 = vmatpush.bf16.xpose.msra.mxu0 0
    %476 = vmatpush.bf16.xpose.msra.mxu0 0
    %477 = vmatpush.bf16.xpose.msra.mxu0 %v468
    %478 = vmatmul.bf16.gmra.mxu0 %v465
    %v479 = vpop.f32.mrf.mxu0
    %v480 = vadd.f32 0.0, %v479
    %v481 = vpop.f32.mrf.mxu0
    %482 = vdwg.mxu0
    %v484 = vunpack.c.l.b16 %v167
    %v485 = vpack.c.b16 %v484, %v484
    %486 = vrot.lane.b32.xlu0 %v485, 96
    %v487 = vpop.permute.xlu0 %486
    %v489 = vsel %vm175, %v167, 0
    %v492 = vsel %vm175, %v487, 0
    %494 = vmatpush.bf16.xpose.msra.mxu0 0
    %495 = vmatpush.bf16.xpose.msra.mxu0 0
    %496 = vmatpush.bf16.xpose.msra.mxu0 0
    %497 = vmatpush.bf16.xpose.msra.mxu0 0
    %498 = vmatpush.bf16.xpose.msra.mxu0 0
    %499 = vmatpush.bf16.xpose.msra.mxu0 0
    %500 = vmatpush.bf16.xpose.msra.mxu0 0
    %501 = vmatpush.bf16.xpose.msra.mxu0 %v492
    %502 = vmatmul.bf16.gmra.mxu0 %v489
    %v503 = vpop.f32.mrf.mxu0
    %v504 = vadd.f32 0.0, %v503
    %v505 = vpop.f32.mrf.mxu0
    %506 = vdwg.mxu0
    %v508 = vunpack.c.l.b16 %v168
    %v509 = vpack.c.b16 %v508, %v508
    %510 = vrot.lane.b32.xlu0 %v509, 96
    %v511 = vpop.permute.xlu0 %510
    %v513 = vsel %vm175, %v168, 0
    %v516 = vsel %vm175, %v511, 0
    %518 = vmatpush.bf16.xpose.msra.mxu0 0
    %519 = vmatpush.bf16.xpose.msra.mxu0 0
    %520 = vmatpush.bf16.xpose.msra.mxu0 0
    %521 = vmatpush.bf16.xpose.msra.mxu0 0
    %522 = vmatpush.bf16.xpose.msra.mxu0 0
    %523 = vmatpush.bf16.xpose.msra.mxu0 0
    %524 = vmatpush.bf16.xpose.msra.mxu0 0
    %525 = vmatpush.bf16.xpose.msra.mxu0 %v516
    %526 = vmatmul.bf16.gmra.mxu0 %v513
    %v527 = vpop.f32.mrf.mxu0
    %v528 = vadd.f32 0.0, %v527
    %v529 = vpop.f32.mrf.mxu0
    %530 = vdwg.mxu0
    %v532 = vunpack.c.l.b16 %v169
    %v533 = vpack.c.b16 %v532, %v532
    %534 = vrot.lane.b32.xlu0 %v533, 96
    %v535 = vpop.permute.xlu0 %534
    %v537 = vsel %vm175, %v169, 0
    %v540 = vsel %vm175, %v535, 0
    %542 = vmatpush.bf16.xpose.msra.mxu0 0
    %543 = vmatpush.bf16.xpose.msra.mxu0 0
    %544 = vmatpush.bf16.xpose.msra.mxu0 0
    %545 = vmatpush.bf16.xpose.msra.mxu0 0
    %546 = vmatpush.bf16.xpose.msra.mxu0 0
    %547 = vmatpush.bf16.xpose.msra.mxu0 0
    %548 = vmatpush.bf16.xpose.msra.mxu0 0
    %549 = vmatpush.bf16.xpose.msra.mxu0 %v540
    %550 = vmatmul.bf16.gmra.mxu0 %v537
    %v551 = vpop.f32.mrf.mxu0
    %v552 = vadd.f32 0.0, %v551
    %v553 = vpop.f32.mrf.mxu0
    %554 = vdwg.mxu0
    %vm555 = vcmask 64512
    %v556 = vsel %vm555, %v192, -inf
    %557 = vmax.xlane.f32.xlu0 %v556
    %v558 = vpop.xlane.xlu0 %557
    %v559 = vsel %vm555, %v216, -inf
    %560 = vmax.xlane.f32.xlu0 %v559
    %v561 = vpop.xlane.xlu0 %560
    %v562 = vsel %vm555, %v240, -inf
    %563 = vmax.xlane.f32.xlu0 %v562
    %v564 = vpop.xlane.xlu0 %563
    %v565 = vsel %vm555, %v264, -inf
    %566 = vmax.xlane.f32.xlu0 %v565
    %v567 = vpop.xlane.xlu0 %566
    %v568 = vsel %vm555, %v288, -inf
    %569 = vmax.xlane.f32.xlu0 %v568
    %v570 = vpop.xlane.xlu0 %569
    %v571 = vsel %vm555, %v312, -inf
    %572 = vmax.xlane.f32.xlu0 %v571
    %v573 = vpop.xlane.xlu0 %572
    %v574 = vsel %vm555, %v336, -inf
    %575 = vmax.xlane.f32.xlu0 %v574
    %v576 = vpop.xlane.xlu0 %575
    %v577 = vsel %vm555, %v360, -inf
    %578 = vmax.xlane.f32.xlu0 %v577
    %v579 = vpop.xlane.xlu0 %578
    %v580 = vsel %vm555, %v384, -inf
    %581 = vmax.xlane.f32.xlu0 %v580
    %v582 = vpop.xlane.xlu0 %581
    %v583 = vsel %vm555, %v408, -inf
    %584 = vmax.xlane.f32.xlu0 %v583
    %v585 = vpop.xlane.xlu0 %584
    %v586 = vsel %vm555, %v432, -inf
    %587 = vmax.xlane.f32.xlu0 %v586
    %v588 = vpop.xlane.xlu0 %587
    %v589 = vsel %vm555, %v456, -inf
    %590 = vmax.xlane.f32.xlu0 %v589
    %v591 = vpop.xlane.xlu0 %590
    %v592 = vsel %vm555, %v480, -inf
    %593 = vmax.xlane.f32.xlu0 %v592
    %v594 = vpop.xlane.xlu0 %593
    %v595 = vsel %vm555, %v504, -inf
    %596 = vmax.xlane.f32.xlu0 %v595
    %v597 = vpop.xlane.xlu0 %596
    %v598 = vsel %vm555, %v528, -inf
    %599 = vmax.xlane.f32.xlu0 %v598
    %v600 = vpop.xlane.xlu0 %599
    %v601 = vsel %vm555, %v552, -inf
    %602 = vmax.xlane.f32.xlu0 %v601
    %v603 = vpop.xlane.xlu0 %602
    %v604 = vsub.f32 %v192, %v558
    %v605 = vsub.f32 %v216, %v561
    %v606 = vsub.f32 %v240, %v564
    %v607 = vsub.f32 %v264, %v567
    %v608 = vsub.f32 %v288, %v570
    %v609 = vsub.f32 %v312, %v573
    %v610 = vsub.f32 %v336, %v576
    %v611 = vsub.f32 %v360, %v579
    %v612 = vsub.f32 %v384, %v582
    %v613 = vsub.f32 %v408, %v585
    %v614 = vsub.f32 %v432, %v588
    %v615 = vsub.f32 %v456, %v591
    %v616 = vsub.f32 %v480, %v594
    %v617 = vsub.f32 %v504, %v597
    %v618 = vsub.f32 %v528, %v600
    %v619 = vsub.f32 %v552, %v603
    %v620 = vmul.f32 %v604, 1.442695
    %v621 = vpow.pop %v620
    %v622 = vmul.f32 %v605, 1.442695
    %v623 = vpow.pop %v622
    %v624 = vmul.f32 %v606, 1.442695
    %v625 = vpow.pop %v624
    %v626 = vmul.f32 %v607, 1.442695
    %v627 = vpow.pop %v626
    %v628 = vmul.f32 %v608, 1.442695
    %v629 = vpow.pop %v628
    %v630 = vmul.f32 %v609, 1.442695
    %v631 = vpow.pop %v630
    %v632 = vmul.f32 %v610, 1.442695
    %v633 = vpow.pop %v632
    %v634 = vmul.f32 %v611, 1.442695
    %v635 = vpow.pop %v634
    %v636 = vmul.f32 %v612, 1.442695
    %v637 = vpow.pop %v636
    %v638 = vmul.f32 %v613, 1.442695
    %v639 = vpow.pop %v638
    %v640 = vmul.f32 %v614, 1.442695
    %v641 = vpow.pop %v640
    %v642 = vmul.f32 %v615, 1.442695
    %v643 = vpow.pop %v642
    %v644 = vmul.f32 %v616, 1.442695
    %v645 = vpow.pop %v644
    %v646 = vmul.f32 %v617, 1.442695
    %v647 = vpow.pop %v646
    %v648 = vmul.f32 %v618, 1.442695
    %v649 = vpow.pop %v648
    %v650 = vmul.f32 %v619, 1.442695
    %v651 = vpow.pop %v650
    %v652 = vsel %vm555, %v621, 0.0
    %653 = vadd.xlane.f32.xlu0 %v652
    %v654 = vpop.xlane.xlu0 %653
    %v655 = vsel %vm555, %v623, 0.0
    %656 = vadd.xlane.f32.xlu0 %v655
    %v657 = vpop.xlane.xlu0 %656
    %v658 = vsel %vm555, %v625, 0.0
    %659 = vadd.xlane.f32.xlu0 %v658
    %v660 = vpop.xlane.xlu0 %659
    %v661 = vsel %vm555, %v627, 0.0
    %662 = vadd.xlane.f32.xlu0 %v661
    %v663 = vpop.xlane.xlu0 %662
    %v664 = vsel %vm555, %v629, 0.0
    %665 = vadd.xlane.f32.xlu0 %v664
    %v666 = vpop.xlane.xlu0 %665
    %v667 = vsel %vm555, %v631, 0.0
    %668 = vadd.xlane.f32.xlu0 %v667
    %v669 = vpop.xlane.xlu0 %668
    %v670 = vsel %vm555, %v633, 0.0
    %671 = vadd.xlane.f32.xlu0 %v670
    %v672 = vpop.xlane.xlu0 %671
    %v673 = vsel %vm555, %v635, 0.0
    %674 = vadd.xlane.f32.xlu0 %v673
    %v675 = vpop.xlane.xlu0 %674
    %v676 = vsel %vm555, %v637, 0.0
    %677 = vadd.xlane.f32.xlu0 %v676
    %v678 = vpop.xlane.xlu0 %677
    %v679 = vsel %vm555, %v639, 0.0
    %680 = vadd.xlane.f32.xlu0 %v679
    %v681 = vpop.xlane.xlu0 %680
    %v682 = vsel %vm555, %v641, 0.0
    %683 = vadd.xlane.f32.xlu0 %v682
    %v684 = vpop.xlane.xlu0 %683
    %v685 = vsel %vm555, %v643, 0.0
    %686 = vadd.xlane.f32.xlu0 %v685
    %v687 = vpop.xlane.xlu0 %686
    %v688 = vsel %vm555, %v645, 0.0
    %689 = vadd.xlane.f32.xlu0 %v688
    %v690 = vpop.xlane.xlu0 %689
    %v691 = vsel %vm555, %v647, 0.0
    %692 = vadd.xlane.f32.xlu0 %v691
    %v693 = vpop.xlane.xlu0 %692
    %v694 = vsel %vm555, %v649, 0.0
    %695 = vadd.xlane.f32.xlu0 %v694
    %v696 = vpop.xlane.xlu0 %695
    %v697 = vsel %vm555, %v651, 0.0
    %698 = vadd.xlane.f32.xlu0 %v697
    %v699 = vpop.xlane.xlu0 %698
    %v700 = vrcp.pop %v654
    %v701 = vrcp.pop %v657
    %v702 = vrcp.pop %v660
    %v703 = vrcp.pop %v663
    %v704 = vrcp.pop %v666
    %v705 = vrcp.pop %v669
    %v706 = vrcp.pop %v672
    %v707 = vrcp.pop %v675
    %v708 = vrcp.pop %v678
    %v709 = vrcp.pop %v681
    %v710 = vrcp.pop %v684
    %v711 = vrcp.pop %v687
    %v712 = vrcp.pop %v690
    %v713 = vrcp.pop %v693
    %v714 = vrcp.pop %v696
    %v715 = vrcp.pop %v699
    %v716 = vmul.f32 %v621, %v700
    %v717 = vmul.f32 %v623, %v701
    %v718 = vmul.f32 %v625, %v702
    %v719 = vmul.f32 %v627, %v703
    %v720 = vmul.f32 %v629, %v704
    %v721 = vmul.f32 %v631, %v705
    %v722 = vmul.f32 %v633, %v706
    %v723 = vmul.f32 %v635, %v707
    %v724 = vmul.f32 %v637, %v708
    %v725 = vmul.f32 %v639, %v709
    %v726 = vmul.f32 %v641, %v710
    %v727 = vmul.f32 %v643, %v711
    %v728 = vmul.f32 %v645, %v712
    %v729 = vmul.f32 %v647, %v713
    %v730 = vmul.f32 %v649, %v714
    %v731 = vmul.f32 %v651, %v715
    %v732 = vpack.c.bf16 %v716, %v716
    %v733 = vpack.c.bf16 %v717, %v717
    %v734 = vpack.c.bf16 %v718, %v718
    %v735 = vpack.c.bf16 %v719, %v719
    %v736 = vpack.c.bf16 %v720, %v720
    %v737 = vpack.c.bf16 %v721, %v721
    %v738 = vpack.c.bf16 %v722, %v722
    %v739 = vpack.c.bf16 %v723, %v723
    %v740 = vpack.c.bf16 %v724, %v724
    %v741 = vpack.c.bf16 %v725, %v725
    %v742 = vpack.c.bf16 %v726, %v726
    %v743 = vpack.c.bf16 %v727, %v727
    %v744 = vpack.c.bf16 %v728, %v728
    %v745 = vpack.c.bf16 %v729, %v729
    %v746 = vpack.c.bf16 %v730, %v730
    %v747 = vpack.c.bf16 %v731, %v731
    %748 = vrot.lane.b32.xlu0 %v172, 64
    %v749 = vpop.permute.xlu0 %748
    %v751 = vsel %vm555, %v732, 0
    %vm753 = vcmask 1043456
    %v755 = vsel %vm753, %v749, 0
    %757 = vmatpush.bf16.msra.mxu0 0
    %758 = vmatpush.bf16.msra.mxu0 0
    %759 = vmatpush.bf16.msra.mxu0 0
    %760 = vmatpush.bf16.msra.mxu0 0
    %761 = vmatpush.bf16.msra.mxu0 0
    %762 = vmatpush.bf16.msra.mxu0 0
    %763 = vmatpush.bf16.msra.mxu0 0
    %764 = vmatpush.bf16.msra.mxu0 %v755
    %765 = vmatmul.bf16.gmra.mxu0 %v751
    %v766 = vpop.f32.mrf.mxu0
    %v767 = vadd.f32 0.0, %v766
    %v768 = vpop.f32.mrf.mxu0
    %769 = vdwg.mxu0
    %770 = vrot.lane.b32.xlu0 %v197, 64
    %v771 = vpop.permute.xlu0 %770
    %v773 = vsel %vm555, %v733, 0
    %v776 = vsel %vm753, %v771, 0
    %778 = vmatpush.bf16.msra.mxu0 0
    %779 = vmatpush.bf16.msra.mxu0 0
    %780 = vmatpush.bf16.msra.mxu0 0
    %781 = vmatpush.bf16.msra.mxu0 0
    %782 = vmatpush.bf16.msra.mxu0 0
    %783 = vmatpush.bf16.msra.mxu0 0
    %784 = vmatpush.bf16.msra.mxu0 0
    %785 = vmatpush.bf16.msra.mxu0 %v776
    %786 = vmatmul.bf16.gmra.mxu0 %v773
    %v787 = vpop.f32.mrf.mxu0
    %v788 = vadd.f32 0.0, %v787
    %v789 = vpop.f32.mrf.mxu0
    %790 = vdwg.mxu0
    %791 = vrot.lane.b32.xlu0 %v221, 64
    %v792 = vpop.permute.xlu0 %791
    %v794 = vsel %vm555, %v734, 0
    %v797 = vsel %vm753, %v792, 0
    %799 = vmatpush.bf16.msra.mxu0 0
    %800 = vmatpush.bf16.msra.mxu0 0
    %801 = vmatpush.bf16.msra.mxu0 0
    %802 = vmatpush.bf16.msra.mxu0 0
    %803 = vmatpush.bf16.msra.mxu0 0
    %804 = vmatpush.bf16.msra.mxu0 0
    %805 = vmatpush.bf16.msra.mxu0 0
    %806 = vmatpush.bf16.msra.mxu0 %v797
    %807 = vmatmul.bf16.gmra.mxu0 %v794
    %v808 = vpop.f32.mrf.mxu0
    %v809 = vadd.f32 0.0, %v808
    %v810 = vpop.f32.mrf.mxu0
    %811 = vdwg.mxu0
    %812 = vrot.lane.b32.xlu0 %v245, 64
    %v813 = vpop.permute.xlu0 %812
    %v815 = vsel %vm555, %v735, 0
    %v818 = vsel %vm753, %v813, 0
    %820 = vmatpush.bf16.msra.mxu0 0
    %821 = vmatpush.bf16.msra.mxu0 0
    %822 = vmatpush.bf16.msra.mxu0 0
    %823 = vmatpush.bf16.msra.mxu0 0
    %824 = vmatpush.bf16.msra.mxu0 0
    %825 = vmatpush.bf16.msra.mxu0 0
    %826 = vmatpush.bf16.msra.mxu0 0
    %827 = vmatpush.bf16.msra.mxu0 %v818
    %828 = vmatmul.bf16.gmra.mxu0 %v815
    %v829 = vpop.f32.mrf.mxu0
    %v830 = vadd.f32 0.0, %v829
    %v831 = vpop.f32.mrf.mxu0
    %832 = vdwg.mxu0
    %833 = vrot.lane.b32.xlu0 %v269, 64
    %v834 = vpop.permute.xlu0 %833
    %v836 = vsel %vm555, %v736, 0
    %v839 = vsel %vm753, %v834, 0
    %841 = vmatpush.bf16.msra.mxu0 0
    %842 = vmatpush.bf16.msra.mxu0 0
    %843 = vmatpush.bf16.msra.mxu0 0
    %844 = vmatpush.bf16.msra.mxu0 0
    %845 = vmatpush.bf16.msra.mxu0 0
    %846 = vmatpush.bf16.msra.mxu0 0
    %847 = vmatpush.bf16.msra.mxu0 0
    %848 = vmatpush.bf16.msra.mxu0 %v839
    %849 = vmatmul.bf16.gmra.mxu0 %v836
    %v850 = vpop.f32.mrf.mxu0
    %v851 = vadd.f32 0.0, %v850
    %v852 = vpop.f32.mrf.mxu0
    %853 = vdwg.mxu0
    %854 = vrot.lane.b32.xlu0 %v293, 64
    %v855 = vpop.permute.xlu0 %854
    %v857 = vsel %vm555, %v737, 0
    %v860 = vsel %vm753, %v855, 0
    %862 = vmatpush.bf16.msra.mxu0 0
    %863 = vmatpush.bf16.msra.mxu0 0
    %864 = vmatpush.bf16.msra.mxu0 0
    %865 = vmatpush.bf16.msra.mxu0 0
    %866 = vmatpush.bf16.msra.mxu0 0
    %867 = vmatpush.bf16.msra.mxu0 0
    %868 = vmatpush.bf16.msra.mxu0 0
    %869 = vmatpush.bf16.msra.mxu0 %v860
    %870 = vmatmul.bf16.gmra.mxu0 %v857
    %v871 = vpop.f32.mrf.mxu0
    %v872 = vadd.f32 0.0, %v871
    %v873 = vpop.f32.mrf.mxu0
    %874 = vdwg.mxu0
    %875 = vrot.lane.b32.xlu0 %v317, 64
    %v876 = vpop.permute.xlu0 %875
    %v878 = vsel %vm555, %v738, 0
    %v881 = vsel %vm753, %v876, 0
    %883 = vmatpush.bf16.msra.mxu0 0
    %884 = vmatpush.bf16.msra.mxu0 0
    %885 = vmatpush.bf16.msra.mxu0 0
    %886 = vmatpush.bf16.msra.mxu0 0
    %887 = vmatpush.bf16.msra.mxu0 0
    %888 = vmatpush.bf16.msra.mxu0 0
    %889 = vmatpush.bf16.msra.mxu0 0
    %890 = vmatpush.bf16.msra.mxu0 %v881
    %891 = vmatmul.bf16.gmra.mxu0 %v878
    %v892 = vpop.f32.mrf.mxu0
    %v893 = vadd.f32 0.0, %v892
    %v894 = vpop.f32.mrf.mxu0
    %895 = vdwg.mxu0
    %896 = vrot.lane.b32.xlu0 %v341, 64
    %v897 = vpop.permute.xlu0 %896
    %v899 = vsel %vm555, %v739, 0
    %v902 = vsel %vm753, %v897, 0
    %904 = vmatpush.bf16.msra.mxu0 0
    %905 = vmatpush.bf16.msra.mxu0 0
    %906 = vmatpush.bf16.msra.mxu0 0
    %907 = vmatpush.bf16.msra.mxu0 0
    %908 = vmatpush.bf16.msra.mxu0 0
    %909 = vmatpush.bf16.msra.mxu0 0
    %910 = vmatpush.bf16.msra.mxu0 0
    %911 = vmatpush.bf16.msra.mxu0 %v902
    %912 = vmatmul.bf16.gmra.mxu0 %v899
    %v913 = vpop.f32.mrf.mxu0
    %v914 = vadd.f32 0.0, %v913
    %v915 = vpop.f32.mrf.mxu0
    %916 = vdwg.mxu0
    %917 = vrot.lane.b32.xlu0 %v365, 64
    %v918 = vpop.permute.xlu0 %917
    %v920 = vsel %vm555, %v740, 0
    %v923 = vsel %vm753, %v918, 0
    %925 = vmatpush.bf16.msra.mxu0 0
    %926 = vmatpush.bf16.msra.mxu0 0
    %927 = vmatpush.bf16.msra.mxu0 0
    %928 = vmatpush.bf16.msra.mxu0 0
    %929 = vmatpush.bf16.msra.mxu0 0
    %930 = vmatpush.bf16.msra.mxu0 0
    %931 = vmatpush.bf16.msra.mxu0 0
    %932 = vmatpush.bf16.msra.mxu0 %v923
    %933 = vmatmul.bf16.gmra.mxu0 %v920
    %v934 = vpop.f32.mrf.mxu0
    %v935 = vadd.f32 0.0, %v934
    %v936 = vpop.f32.mrf.mxu0
    %937 = vdwg.mxu0
    %938 = vrot.lane.b32.xlu0 %v389, 64
    %v939 = vpop.permute.xlu0 %938
    %v941 = vsel %vm555, %v741, 0
    %v944 = vsel %vm753, %v939, 0
    %946 = vmatpush.bf16.msra.mxu0 0
    %947 = vmatpush.bf16.msra.mxu0 0
    %948 = vmatpush.bf16.msra.mxu0 0
    %949 = vmatpush.bf16.msra.mxu0 0
    %950 = vmatpush.bf16.msra.mxu0 0
    %951 = vmatpush.bf16.msra.mxu0 0
    %952 = vmatpush.bf16.msra.mxu0 0
    %953 = vmatpush.bf16.msra.mxu0 %v944
    %954 = vmatmul.bf16.gmra.mxu0 %v941
    %v955 = vpop.f32.mrf.mxu0
    %v956 = vadd.f32 0.0, %v955
    %v957 = vpop.f32.mrf.mxu0
    %958 = vdwg.mxu0
    %959 = vrot.lane.b32.xlu0 %v413, 64
    %v960 = vpop.permute.xlu0 %959
    %v962 = vsel %vm555, %v742, 0
    %v965 = vsel %vm753, %v960, 0
    %967 = vmatpush.bf16.msra.mxu0 0
    %968 = vmatpush.bf16.msra.mxu0 0
    %969 = vmatpush.bf16.msra.mxu0 0
    %970 = vmatpush.bf16.msra.mxu0 0
    %971 = vmatpush.bf16.msra.mxu0 0
    %972 = vmatpush.bf16.msra.mxu0 0
    %973 = vmatpush.bf16.msra.mxu0 0
    %974 = vmatpush.bf16.msra.mxu0 %v965
    %975 = vmatmul.bf16.gmra.mxu0 %v962
    %v976 = vpop.f32.mrf.mxu0
    %v977 = vadd.f32 0.0, %v976
    %v978 = vpop.f32.mrf.mxu0
    %979 = vdwg.mxu0
    %980 = vrot.lane.b32.xlu0 %v437, 64
    %v981 = vpop.permute.xlu0 %980
    %v983 = vsel %vm555, %v743, 0
    %v986 = vsel %vm753, %v981, 0
    %988 = vmatpush.bf16.msra.mxu0 0
    %989 = vmatpush.bf16.msra.mxu0 0
    %990 = vmatpush.bf16.msra.mxu0 0
    %991 = vmatpush.bf16.msra.mxu0 0
    %992 = vmatpush.bf16.msra.mxu0 0
    %993 = vmatpush.bf16.msra.mxu0 0
    %994 = vmatpush.bf16.msra.mxu0 0
    %995 = vmatpush.bf16.msra.mxu0 %v986
    %996 = vmatmul.bf16.gmra.mxu0 %v983
    %v997 = vpop.f32.mrf.mxu0
    %v998 = vadd.f32 0.0, %v997
    %v999 = vpop.f32.mrf.mxu0
    %1000 = vdwg.mxu0
    %1001 = vrot.lane.b32.xlu0 %v461, 64
    %v1002 = vpop.permute.xlu0 %1001
    %v1004 = vsel %vm555, %v744, 0
    %v1007 = vsel %vm753, %v1002, 0
    %1009 = vmatpush.bf16.msra.mxu0 0
    %1010 = vmatpush.bf16.msra.mxu0 0
    %1011 = vmatpush.bf16.msra.mxu0 0
    %1012 = vmatpush.bf16.msra.mxu0 0
    %1013 = vmatpush.bf16.msra.mxu0 0
    %1014 = vmatpush.bf16.msra.mxu0 0
    %1015 = vmatpush.bf16.msra.mxu0 0
    %1016 = vmatpush.bf16.msra.mxu0 %v1007
    %1017 = vmatmul.bf16.gmra.mxu0 %v1004
    %v1018 = vpop.f32.mrf.mxu0
    %v1019 = vadd.f32 0.0, %v1018
    %v1020 = vpop.f32.mrf.mxu0
    %1021 = vdwg.mxu0
    %1022 = vrot.lane.b32.xlu0 %v485, 64
    %v1023 = vpop.permute.xlu0 %1022
    %v1025 = vsel %vm555, %v745, 0
    %v1028 = vsel %vm753, %v1023, 0
    %1030 = vmatpush.bf16.msra.mxu0 0
    %1031 = vmatpush.bf16.msra.mxu0 0
    %1032 = vmatpush.bf16.msra.mxu0 0
    %1033 = vmatpush.bf16.msra.mxu0 0
    %1034 = vmatpush.bf16.msra.mxu0 0
    %1035 = vmatpush.bf16.msra.mxu0 0
    %1036 = vmatpush.bf16.msra.mxu0 0
    %1037 = vmatpush.bf16.msra.mxu0 %v1028
    %1038 = vmatmul.bf16.gmra.mxu0 %v1025
    %v1039 = vpop.f32.mrf.mxu0
    %v1040 = vadd.f32 0.0, %v1039
    %v1041 = vpop.f32.mrf.mxu0
    %1042 = vdwg.mxu0
    %1043 = vrot.lane.b32.xlu0 %v509, 64
    %v1044 = vpop.permute.xlu0 %1043
    %v1046 = vsel %vm555, %v746, 0
    %v1049 = vsel %vm753, %v1044, 0
    %1051 = vmatpush.bf16.msra.mxu0 0
    %1052 = vmatpush.bf16.msra.mxu0 0
    %1053 = vmatpush.bf16.msra.mxu0 0
    %1054 = vmatpush.bf16.msra.mxu0 0
    %1055 = vmatpush.bf16.msra.mxu0 0
    %1056 = vmatpush.bf16.msra.mxu0 0
    %1057 = vmatpush.bf16.msra.mxu0 0
    %1058 = vmatpush.bf16.msra.mxu0 %v1049
    %1059 = vmatmul.bf16.gmra.mxu0 %v1046
    %v1060 = vpop.f32.mrf.mxu0
    %v1061 = vadd.f32 0.0, %v1060
    %v1062 = vpop.f32.mrf.mxu0
    %1063 = vdwg.mxu0
    %1064 = vrot.lane.b32.xlu0 %v533, 64
    %v1065 = vpop.permute.xlu0 %1064
    %v1067 = vsel %vm555, %v747, 0
    %v1070 = vsel %vm753, %v1065, 0
    %1072 = vmatpush.bf16.msra.mxu0 0
    %1073 = vmatpush.bf16.msra.mxu0 0
    %1074 = vmatpush.bf16.msra.mxu0 0
    %1075 = vmatpush.bf16.msra.mxu0 0
    %1076 = vmatpush.bf16.msra.mxu0 0
    %1077 = vmatpush.bf16.msra.mxu0 0
    %1078 = vmatpush.bf16.msra.mxu0 0
    %1079 = vmatpush.bf16.msra.mxu0 %v1070
    %1080 = vmatmul.bf16.gmra.mxu0 %v1067
    %v1081 = vpop.f32.mrf.mxu0
    %v1082 = vadd.f32 0.0, %v1081
    %v1083 = vpop.f32.mrf.mxu0
    %1084 = vdwg.mxu0
    %1085 = vst.msk [vmem:[#allocation2] sm:$0xff] %vm175, %v767
    %1086 = vst.msk [vmem:[#allocation2 + $0x8] sm:$0xff] %vm175, %v788
    %1089 = vrot.lane.b32.xlu0 %v809, 4
    %v1090 = vpop.permute.xlu0 %1089
    %1091 = vrot.lane.b32.xlu0 %v830, 4
    %v1092 = vpop.permute.xlu0 %1091
    %vm1095 = vcmask 64544
    %1096 = vst.msk [vmem:[#allocation2] sm:$0xff] %vm1095, %v1090
    %1097 = vst.msk [vmem:[#allocation2 + $0x8] sm:$0xff] %vm1095, %v1092
    %1100 = vrot.lane.b32.xlu0 %v851, 8
    %v1101 = vpop.permute.xlu0 %1100
    %1102 = vrot.lane.b32.xlu0 %v872, 8
    %v1103 = vpop.permute.xlu0 %1102
    %vm1106 = vcmask 97344
    %1107 = vst.msk [vmem:[#allocation2] sm:$0xff] %vm1106, %v1101
    %1108 = vst.msk [vmem:[#allocation2 + $0x8] sm:$0xff] %vm1106, %v1103
    %1111 = vrot.lane.b32.xlu0 %v893, 12
    %v1112 = vpop.permute.xlu0 %1111
    %1113 = vrot.lane.b32.xlu0 %v914, 12
    %v1114 = vpop.permute.xlu0 %1113
    %vm1117 = vcmask 130144
    %1118 = vst.msk [vmem:[#allocation2] sm:$0xff] %vm1117, %v1112
    %1119 = vst.msk [vmem:[#allocation2 + $0x8] sm:$0xff] %vm1117, %v1114
    %1122 = vrot.lane.b32.xlu0 %v935, 16
    %v1123 = vpop.permute.xlu0 %1122
    %1124 = vrot.lane.b32.xlu0 %v956, 16
    %v1125 = vpop.permute.xlu0 %1124
    %vm1128 = vcmask 162944
    %1129 = vst.msk [vmem:[#allocation2] sm:$0xff] %vm1128, %v1123
    %1130 = vst.msk [vmem:[#allocation2 + $0x8] sm:$0xff] %vm1128, %v1125
    %1133 = vrot.lane.b32.xlu0 %v977, 20
    %v1134 = vpop.permute.xlu0 %1133
    %1135 = vrot.lane.b32.xlu0 %v998, 20
    %v1136 = vpop.permute.xlu0 %1135
    %vm1139 = vcmask 195744
    %1140 = vst.msk [vmem:[#allocation2] sm:$0xff] %vm1139, %v1134
    %1141 = vst.msk [vmem:[#allocation2 + $0x8] sm:$0xff] %vm1139, %v1136
    %1144 = vrot.lane.b32.xlu0 %v1019, 24
    %v1145 = vpop.permute.xlu0 %1144
    %1146 = vrot.lane.b32.xlu0 %v1040, 24
    %v1147 = vpop.permute.xlu0 %1146
    %vm1150 = vcmask 228544
    %1151 = vst.msk [vmem:[#allocation2] sm:$0xff] %vm1150, %v1145
    %1152 = vst.msk [vmem:[#allocation2 + $0x8] sm:$0xff] %vm1150, %v1147
    %1155 = vrot.lane.b32.xlu0 %v1061, 28
    %v1156 = vpop.permute.xlu0 %1155
    %1157 = vrot.lane.b32.xlu0 %v1082, 28
    %v1158 = vpop.permute.xlu0 %1157
    %vm1161 = vcmask 261344
    %1162 = vst.msk [vmem:[#allocation2] sm:$0xff] %vm1161, %v1156
    %1163 = vst.msk [vmem:[#allocation2 + $0x8] sm:$0xff] %vm1161, %v1158
    %v1164 = vld [vmem:[#allocation2] sm:$0xff]
    %v1165 = vld [vmem:[#allocation2 + $0x8] sm:$0xff]
    %v1166 = vpack.c.bf16 %v1165, %v1164
    %v1167 = vld [vmem:[#allocation8] sm:$0xf]
    %v1168 = vld [vmem:[#allocation8 + $0x4] sm:$0xf]
    %v1169 = vld [vmem:[#allocation8 + $0x8] sm:$0xf]
    %v1170 = vld [vmem:[#allocation8 + $0xc] sm:$0xf]
    %v1171 = vld [vmem:[%s4] sm:$0x1]
    %v1173 = vperm.slane %v1171, 0
    %v1179 = vunpack.c.l.b16 %v1167
    %v1180 = vunpack.c.l.b16 %v1168
    %v1181 = vunpack.c.l.b16 %v1169
    %v1182 = vunpack.c.l.b16 %v1170
    %v1183 = vpack.c.b16 %v1180, %v1179
    %v1184 = vpack.c.b16 %v1182, %v1181
    %v1188 = vsel %vm92, %v1166, 0
    %1190 = vmatpush.bf16.msra.mxu0 0
    %1191 = vmatpush.bf16.msra.mxu0 0
    %1192 = vmatpush.bf16.msra.mxu0 0
    %1193 = vmatpush.bf16.msra.mxu0 0
    %1194 = vmatpush.bf16.msra.mxu0 0
    %1195 = vmatpush.bf16.msra.mxu0 0
    %1196 = vmatpush.bf16.msra.mxu0 %v1184
    %1197 = vmatpush.bf16.msra.mxu0 %v1183
    %1198 = vmatmul.bf16.gmra.mxu0 %v1188
    %v1199 = vpop.f32.mrf.mxu0
    %v1200 = vadd.f32 %v1173, %v1199
    %v1201 = vpop.f32.mrf.mxu0
    %v1202 = vadd.f32 %v1173, %v1201
    %1203 = vdwg.mxu0
    %1204 = vst.msk [vmem:[#allocation9] sm:$0xff] %vm92, %v1200
    %1205 = vst.msk [vmem:[#allocation9 + $0x8] sm:$0xff] %vm92, %v1202
    // Predicated region
    $region34: #{tpu_custom_call.1} parent=1 // pred_check
      _
    $region35: #{tpu_custom_call.1} parent=1 // pred_check_branch
      %1207 = sbr.rel (0) target = $region37
    $region36: #{tpu_custom_call.1} parent=1 // pred_region
      %1209 = vsyncadd [#allocation5], 0
      %s1210 = sshll.u32 [#allocation9], 4
      %s1211 = int_to_ptr.vmem [resolvable:$true] %s1210
      %s1212 = sshll.u32 %s5, 4
      %s1213 = int_to_ptr.hbm [resolvable:$true] %s1212
      %1218 = dma.vmem_to_hbm [thread:$0]  %s1211, 256, %s1213, [#allocation5], 128, 128, 8
    $region37: #{tpu_custom_call.1} parent=1 // pred_fallthru
      _
    // Predicated region
    $region38: #{tpu_custom_call.1} parent=1 // pred_check
      _
    $region39: #{tpu_custom_call.1} parent=1 // pred_check_branch
      %1220 = sbr.rel (0) target = $region41
    $region40: #{tpu_custom_call.1} parent=1 // pred_region
      %1222 = dma.done [#allocation5], 256
    $region41: #{tpu_custom_call.1} parent=1 // pred_fallthru
      _
    %1223 = vsyncpa [#allocation4], 1
    %1224 = vsyncpa [#allocation7], 1
    %1225 = vsyncpa [#allocation5], 1

</llo_original>
